<compile_context>
chip_gen: v7x
topology: tpu7x:2x2x1
jax: 0.10.0
libtpu: 0.0.40
codegen_flags: <defaults>
</compile_context>

<pallas_src>
import functools

import numpy as np
import jax
import jax.numpy as jnp
from jax import lax
from jax.experimental import pallas as pl
from jax.experimental.pallas import tpu as pltpu


# ---------------------------------------------------------------------------
# Small helpers
# ---------------------------------------------------------------------------
def _pick_tile(n, target, steps=(128, 8)):
    """Largest tile <= target dividing n, preferring multiples of steps[0],
    then steps[1], ...; falls back to the full dimension."""
    if n <= target:
        return n
    for step in steps:
        t = (target // step) * step
        while t >= step:
            if n % t == 0:
                return t
            t -= step
    return n  # pathological shape: full dim (budget loop / Mosaic will complain)


def _lane_bcast(x, width):
    """x: (rows, 128) f32 with all lanes equal -> (rows, width)."""
    lanes = x.shape[-1]
    if width == lanes:
        return x
    if width < lanes:
        return x[:, :width]
    reps, rem = divmod(width, lanes)
    if rem == 0:
        return jnp.tile(x, (1, reps))
    return jnp.broadcast_to(x[:, :1], (x.shape[0], width))


def _attention_tiles(S, D, H, itemsize, budget, q_target, kv_target):
    """D-aware tile selection for the flash-attention kernel."""
    tq = _pick_tile(S, q_target)
    tkv = _pick_tile(S, kv_target)

    def est(tq_, tkv_):
        return (2 * (tq_ + 2 * tkv_) * D * itemsize   # q,k,v double-buffered
                + 2 * tq_ * D * 4                     # output double-buffered
                + 2 * D * D * itemsize                # Wout (constant map, 2 bufs)
                + tq_ * D * 4                         # f32 accumulator scratch
                + 2 * H * tq_ * 128 * 4               # lane-dense m/l scratch
                + 4 * tq_ * tkv_ * 4)                 # s/p intermediates + slack

    while est(tq, tkv) > budget:
        new_tq, new_tkv = tq, tkv
        if tq >= tkv and tq > 128:
            new_tq = _pick_tile(S, max(128, tq // 2))
        elif tkv > 128:
            new_tkv = _pick_tile(S, max(128, tkv // 2))
        if (new_tq, new_tkv) == (tq, tkv):
            break  # cannot shrink further; proceed (Mosaic reports OOM clearly)
        tq, tkv = new_tq, new_tkv
    return tq, tkv


def _proj_tiles(S, D, itemsize, budget, s_target=512, n_target=512):
    """D-aware tile selection for the QKV-projection kernel."""
    ts = _pick_tile(S, s_target)
    tn = _pick_tile(D, n_target, steps=(128,))  # lane dim: 128-multiple or full

    def est(ts_, tn_):
        return (2 * ts_ * D * itemsize          # x double-buffered
                + 3 * 2 * D * tn_ * itemsize    # wq/wk/wv double-buffered
                + 3 * 2 * ts_ * tn_ * itemsize  # q/k/v outputs double-buffered
                + 3 * ts_ * tn_ * 4)            # f32 intermediates

    while est(ts, tn) > budget:
        new_ts, new_tn = ts, tn
        if tn >= ts and tn > 128:
            new_tn = _pick_tile(D, max(128, tn // 2), steps=(128,))
        elif ts > 128:
            new_ts = _pick_tile(S, max(128, ts // 2))
        if (new_ts, new_tn) == (ts, tn):
            break
        ts, tn = new_ts, new_tn
    return ts, tn


# ---------------------------------------------------------------------------
# Kernel 1: fused QKV projection, N-tiled over the output dim
#   (softmax scale folded into q; no K transpose)
# ---------------------------------------------------------------------------
def _qkv_proj_kernel(x_ref, wq_ref, wk_ref, wv_ref, q_ref, k_ref, v_ref, *, scale):
    x = x_ref[0]                                    # (TS, D)   compute dtype
    q = jnp.dot(x, wq_ref[...], preferred_element_type=jnp.float32)  # (TS, TN)
    k = jnp.dot(x, wk_ref[...], preferred_element_type=jnp.float32)
    v = jnp.dot(x, wv_ref[...], preferred_element_type=jnp.float32)
    q_ref[0] = (q * scale).astype(q_ref.dtype)      # fold softmax scale into q
    k_ref[0] = k.astype(k_ref.dtype)                # K stays (B, S, D): no XLU transpose
    v_ref[0] = v.astype(v_ref.dtype)


# ---------------------------------------------------------------------------
# Kernel 2: flash attention (online softmax) + fused output projection
# ---------------------------------------------------------------------------
def _flash_mha_kernel(q_ref, k_ref, v_ref, wout_ref, o_ref,
                      acc_ref, m_ref, l_ref, *,
                      num_heads, head_dim, compute_dtype):
    ki = pl.program_id(2)

    @pl.when(ki == 0)
    def _init():
        m_ref[...] = jnp.full_like(m_ref, -jnp.inf)
        l_ref[...] = jnp.zeros_like(l_ref)
        acc_ref[...] = jnp.zeros_like(acc_ref)

    q = q_ref[0]        # (TQ, D)   already scaled by head_dim**-0.5
    k = k_ref[0]        # (TKV, D)
    v = v_ref[0]        # (TKV, D)
    tkv = k.shape[0]

    # Per-head online softmax.  Heads are lane-aligned column slices of the
    # merged (TQ, D) tiles — no (S,H,hd) reshape/transpose relayouts.
    # TODO(synk): head_dim < 128 underutilizes the MXU (narrow contraction /
    # output); packing two heads per MXU pass would help but is not implemented.
    # TODO(synk): attention mask (mask != None) would be added to `s` here; this
    # implements the mask=None path only.
    for h in range(num_heads):
        lo, hi = h * head_dim, (h + 1) * head_dim
        qh = q[:, lo:hi]          # (TQ, hd)
        kh = k[:, lo:hi]          # (TKV, hd)
        vh = v[:, lo:hi]          # (TKV, hd)

        # QK^T: contract head_dim of both operands (Mosaic handles the
        # transposed RHS on the MXU; no explicit XLU transpose).
        s = lax.dot_general(qh, kh, (((1,), (1,)), ((), ())),
                            preferred_element_type=jnp.float32)   # (TQ, TKV) f32

        m_prev = m_ref[h]                                  # (TQ, 128) lane-dense
        l_prev = l_ref[h]
        m_next = jnp.maximum(m_prev, jnp.max(s, axis=-1, keepdims=True))
        alpha = jnp.exp(m_prev - m_next)                   # (TQ, 128), lanes equal
        # f32 exp (v5e-safe); bf16 exp is an option on v6e/v7x if EUP saturates.
        p = jnp.exp(s - _lane_bcast(m_next, tkv))          # (TQ, TKV) f32

        l_ref[h] = alpha * l_prev + jnp.sum(p, axis=-1, keepdims=True)
        m_ref[h] = m_next

        pv = jnp.dot(p.astype(compute_dtype), vh,
                     preferred_element_type=jnp.float32)   # (TQ, hd) f32
        acc_ref[:, lo:hi] = (_lane_bcast(alpha, head_dim) * acc_ref[:, lo:hi] + pv)

    @pl.when(ki == pl.num_programs(2) - 1)
    def _finalize():
        # Per-head softmax normalization built in registers (EUP approx
        # reciprocal), one pass over acc, then the fused output projection.
        pieces = []
        for h in range(num_heads):
            lo, hi = h * head_dim, (h + 1) * head_dim
            inv = pl.reciprocal(l_ref[h], approx=True)     # (TQ, 128)
            pieces.append(acc_ref[:, lo:hi] * _lane_bcast(inv, head_dim))
        ctx = jnp.concatenate(pieces, axis=-1).astype(compute_dtype)   # (TQ, D)
        out = jnp.dot(ctx, wout_ref[...], preferred_element_type=jnp.float32)
        o_ref[0] = out.astype(o_ref.dtype)


# ---------------------------------------------------------------------------
# Wrapper
# ---------------------------------------------------------------------------
def multi_head_attention(x, w_qkv, w_out, num_heads, *,
                         compute_dtype=jnp.bfloat16,
                         q_tile=None, kv_tile=None):
    """Pallas TPU multi-head attention (mask=None path of the PyTorch module).

    x:      (B, S, D)
    w_qkv:  (3D, D)  nn.Linear weight layout [out_features, in_features]
    w_out:  (D, D)
    """
    B, S, D = x.shape
    assert D % num_heads == 0, "dim must be divisible by num_heads"
    hd = D // num_heads
    scale = float(hd) ** -0.5
    itemsize = np.dtype(compute_dtype).itemsize

    # ---- generation-aware VMEM budget (v7x: 64 MiB/TC; v5e/v6e: 128 MiB) -----
    try:
        vmem_cap = int(pltpu.get_tpu_info().vmem_capacity_bytes)
    except Exception:
        vmem_cap = 64 * 1024 * 1024           # conservative fallback (v7x)
    vmem_cap = max(vmem_cap, 32 * 1024 * 1024)
    vmem_limit = max(32 * 1024 * 1024,
                     min(vmem_cap - 8 * 1024 * 1024, (vmem_cap * 7) // 8))
    budget = (vmem_limit * 7) // 8            # headroom for Mosaic internal scratch

    # Larger query tile on 128-MiB chips: v6e needs TQ~1024 to lift the K/V
    # stream arithmetic intensity past the HBM roofline; 512 on 64-MiB v7x.
    if q_tile is None:
        q_tile = 1024 if vmem_cap >= 100 * 1024 * 1024 else 512
    if kv_tile is None:
        kv_tile = 512

    TQ, TKV = _attention_tiles(S, D, num_heads, itemsize, budget, q_tile, kv_tile)
    TS, TN = _proj_tiles(S, D, itemsize, budget)

    # nn.Linear computes x @ W.T — pre-split/transpose/cast the weights once.
    wq = w_qkv[0 * D:1 * D].T.astype(compute_dtype)   # (D, D)
    wk = w_qkv[1 * D:2 * D].T.astype(compute_dtype)   # (D, D)
    wv = w_qkv[2 * D:3 * D].T.astype(compute_dtype)   # (D, D)
    wo = w_out.T.astype(compute_dtype)                # (D, D)
    x_c = x.astype(compute_dtype)

    # ---- kernel 1: QKV projection (N-tiled over the output dim) --------------
    proj_kernel = functools.partial(_qkv_proj_kernel, scale=scale)
    proj_cost = pl.CostEstimate(
        flops=int(2 * B * S * D * 3 * D),
        transcendentals=0,
        bytes_accessed=int(B * S * D * itemsize + 3 * D * D * itemsize
                           + 3 * B * S * D * itemsize))
    q, k, v = pl.pallas_call(
        proj_kernel,
        out_shape=(jax.ShapeDtypeStruct((B, S, D), compute_dtype),
                   jax.ShapeDtypeStruct((B, S, D), compute_dtype),
                   jax.ShapeDtypeStruct((B, S, D), compute_dtype)),
        grid_spec=pltpu.PrefetchScalarGridSpec(
            num_scalar_prefetch=0,
            grid=(B, S // TS, D // TN),
            in_specs=[
                pl.BlockSpec((1, TS, D), lambda b, s, n: (b, s, 0)),  # x (resident over n)
                pl.BlockSpec((D, TN), lambda b, s, n: (0, n)),        # Wq column tile
                pl.BlockSpec((D, TN), lambda b, s, n: (0, n)),        # Wk column tile
                pl.BlockSpec((D, TN), lambda b, s, n: (0, n)),        # Wv column tile
            ],
            out_specs=(
                pl.BlockSpec((1, TS, TN), lambda b, s, n: (b, s, n)),
                pl.BlockSpec((1, TS, TN), lambda b, s, n: (b, s, n)),
                pl.BlockSpec((1, TS, TN), lambda b, s, n: (b, s, n)),
            )),
        compiler_params=pltpu.CompilerParams(
            dimension_semantics=("parallel", "parallel", "parallel"),
            vmem_limit_bytes=int(vmem_limit)),
        cost_estimate=proj_cost,
    )(x_c, wq, wk, wv)

    # ---- kernel 2: flash attention + fused output projection -----------------
    # TODO(synk): for very large D the resident (D, D) Wout block dominates VMEM;
    # N-tiling the output projection (or splitting it into a third kernel) would
    # relax the tile-shrink pressure on v7x.
    attn_kernel = functools.partial(
        _flash_mha_kernel, num_heads=num_heads, head_dim=hd,
        compute_dtype=compute_dtype)
    attn_cost = pl.CostEstimate(
        flops=int(4 * B * S * S * D + 2 * B * S * D * D),
        transcendentals=int(B * num_heads * S * S),
        bytes_accessed=int(3 * B * S * D * itemsize + D * D * itemsize
                           + B * S * D * x.dtype.itemsize))
    out = pl.pallas_call(
        attn_kernel,
        out_shape=jax.ShapeDtypeStruct((B, S, D), x.dtype),
        grid_spec=pltpu.PrefetchScalarGridSpec(
            num_scalar_prefetch=0,
            grid=(B, S // TQ, S // TKV),       # KV (reduction) axis last
            in_specs=[
                pl.BlockSpec((1, TQ, D), lambda b, qi, ki: (b, qi, 0)),   # q
                pl.BlockSpec((1, TKV, D), lambda b, qi, ki: (b, ki, 0)),  # k
                pl.BlockSpec((1, TKV, D), lambda b, qi, ki: (b, ki, 0)),  # v
                pl.BlockSpec((D, D), lambda b, qi, ki: (0, 0)),           # Wout
            ],
            out_specs=pl.BlockSpec((1, TQ, D), lambda b, qi, ki: (b, qi, 0)),
            scratch_shapes=[
                pltpu.VMEM((TQ, D), jnp.float32),                # acc (all heads)
                pltpu.VMEM((num_heads, TQ, 128), jnp.float32),   # running max (lane-dense)
                pltpu.VMEM((num_heads, TQ, 128), jnp.float32),   # running denom (lane-dense)
            ]),
        compiler_params=pltpu.CompilerParams(
            dimension_semantics=("parallel", "parallel", "arbitrary"),
            vmem_limit_bytes=int(vmem_limit)),
        cost_estimate=attn_cost,
    )(q, k, v, wo)
    return out


# ---------------------------------------------------------------------------
# Pure-JAX reference (mirrors the PyTorch forward, mask=None)
# ---------------------------------------------------------------------------
def reference_mha(x, w_qkv, w_out, num_heads):
    B, S, D = x.shape
    hd = D // num_heads
    qkv = x @ w_qkv.T
    q, k, v = jnp.split(qkv, 3, axis=-1)
    q = q.reshape(B, S, num_heads, hd).transpose(0, 2, 1, 3)
    k = k.reshape(B, S, num_heads, hd).transpose(0, 2, 1, 3)
    v = v.reshape(B, S, num_heads, hd).transpose(0, 2, 1, 3)
    scores = jnp.einsum('bnqd,bnkd->bnqk', q, k) * (hd ** -0.5)
    probs = jax.nn.softmax(scores, axis=-1)
    out = jnp.einsum('bnqk,bnkd->bnqd', probs, v)
    out = out.transpose(0, 2, 1, 3).reshape(B, S, D)
    return out @ w_out.T


if __name__ == "__main__":
    # ---- small shapes consistent with the module ------------------------------
    B, S, D, H = 2, 8, 32, 4
    key = jax.random.PRNGKey(0)
    kx, kq, ko = jax.random.split(key, 3)
    x = jax.random.normal(kx, (B, S, D), dtype=jnp.float32)
    w_qkv = jax.random.normal(kq, (3 * D, D), dtype=jnp.float32) * (D ** -0.5)
    w_out = jax.random.normal(ko, (D, D), dtype=jnp.float32) * (D ** -0.5)

    ref = reference_mha(x, w_qkv, w_out, H)

    out_f32 = jax.block_until_ready(
        multi_head_attention(x, w_qkv, w_out, H, compute_dtype=jnp.float32))
    assert out_f32.shape == (B, S, D)
    assert jnp.allclose(out_f32, ref, atol=5e-3, rtol=5e-3), "f32 path mismatch"

    out_bf16 = jax.block_until_ready(
        multi_head_attention(x, w_qkv, w_out, H, compute_dtype=jnp.bfloat16))
    assert out_bf16.shape == (B, S, D)
    assert jnp.allclose(out_bf16, ref, atol=5e-2, rtol=5e-2), "bf16 path mismatch"

    # ---- medium shapes: exercise multi-tile grid, multi-KV-step online softmax -
    B2, S2, D2, H2 = 1, 1024, 256, 2   # head_dim = 128 (MXU-aligned fast path)
    kx2, kq2, ko2 = jax.random.split(jax.random.PRNGKey(1), 3)
    x2 = jax.random.normal(kx2, (B2, S2, D2), dtype=jnp.float32)
    w_qkv2 = jax.random.normal(kq2, (3 * D2, D2), dtype=jnp.float32) * (D2 ** -0.5)
    w_out2 = jax.random.normal(ko2, (D2, D2), dtype=jnp.float32) * (D2 ** -0.5)

    ref2 = reference_mha(x2, w_qkv2, w_out2, H2)
    out2 = jax.block_until_ready(
        multi_head_attention(x2, w_qkv2, w_out2, H2, compute_dtype=jnp.float32))
    assert out2.shape == (B2, S2, D2)
    assert jnp.allclose(out2, ref2, atol=1e-2, rtol=1e-2), "tiled f32 path mismatch"

    print("KERNEL_OK")
</pallas_src>

<mosaic_0001>
module attributes {stable_mosaic.version = 11 : i64} {
  func.func @_qkv_proj_kernel(%arg0: i32, %arg1: i32, %arg2: i32, %arg3: memref<1x8x32xf32, #tpu.memory_space<vmem>>, %arg4: memref<32x32xf32, #tpu.memory_space<vmem>>, %arg5: memref<32x32xf32, #tpu.memory_space<vmem>>, %arg6: memref<32x32xf32, #tpu.memory_space<vmem>>, %arg7: memref<1x8x32xf32, #tpu.memory_space<vmem>>, %arg8: memref<1x8x32xf32, #tpu.memory_space<vmem>>, %arg9: memref<1x8x32xf32, #tpu.memory_space<vmem>>) attributes {dimension_semantics = [#tpu.dimension_semantics<parallel>, #tpu.dimension_semantics<parallel>, #tpu.dimension_semantics<parallel>], iteration_bounds = array<i64: 2, 1, 1>, scalar_prefetch = 0 : i64, scratch_operands = 0 : i64, tpu.core_type = #tpu.core_type<tc>, window_params = [{transform_indices = @transform_0, window_bounds = array<i64: 1, 8, 32>}, {transform_indices = @transform_1, window_bounds = array<i64: 32, 32>}, {transform_indices = @transform_2, window_bounds = array<i64: 32, 32>}, {transform_indices = @transform_3, window_bounds = array<i64: 32, 32>}, {transform_indices = @transform_4, window_bounds = array<i64: 1, 8, 32>}, {transform_indices = @transform_5, window_bounds = array<i64: 1, 8, 32>}, {transform_indices = @transform_6, window_bounds = array<i64: 1, 8, 32>}]} {
    %c0 = arith.constant 0 : index
    %c0_0 = arith.constant 0 : index
    %c0_1 = arith.constant 0 : index
    %0 = vector.load %arg3[%c0, %c0_0, %c0_1] : memref<1x8x32xf32, #tpu.memory_space<vmem>>, vector<1x8x32xf32>
    %1 = vector.shape_cast %0 : vector<1x8x32xf32> to vector<8x32xf32>
    %c0_2 = arith.constant 0 : index
    %c0_3 = arith.constant 0 : index
    %2 = vector.load %arg4[%c0_2, %c0_3] : memref<32x32xf32, #tpu.memory_space<vmem>>, vector<32x32xf32>
    %cst = arith.constant dense<0.000000e+00> : vector<8x32xf32>
    %3 = tpu.matmul %1, %2, %cst {dimension_numbers = #tpu.dot_dimension_numbers<[1], [0], [0], [1], [0, 0, 1, 1], [], []>} : vector<8x32xf32>, vector<32x32xf32>, vector<8x32xf32> -> vector<8x32xf32>
    %c0_4 = arith.constant 0 : index
    %c0_5 = arith.constant 0 : index
    %4 = vector.load %arg5[%c0_4, %c0_5] : memref<32x32xf32, #tpu.memory_space<vmem>>, vector<32x32xf32>
    %cst_6 = arith.constant dense<0.000000e+00> : vector<8x32xf32>
    %5 = tpu.matmul %1, %4, %cst_6 {dimension_numbers = #tpu.dot_dimension_numbers<[1], [0], [0], [1], [0, 0, 1, 1], [], []>} : vector<8x32xf32>, vector<32x32xf32>, vector<8x32xf32> -> vector<8x32xf32>
    %c0_7 = arith.constant 0 : index
    %c0_8 = arith.constant 0 : index
    %6 = vector.load %arg6[%c0_7, %c0_8] : memref<32x32xf32, #tpu.memory_space<vmem>>, vector<32x32xf32>
    %cst_9 = arith.constant dense<0.000000e+00> : vector<8x32xf32>
    %7 = tpu.matmul %1, %6, %cst_9 {dimension_numbers = #tpu.dot_dimension_numbers<[1], [0], [0], [1], [0, 0, 1, 1], [], []>} : vector<8x32xf32>, vector<32x32xf32>, vector<8x32xf32> -> vector<8x32xf32>
    %cst_10 = arith.constant 0.353553385 : f32
    %8 = vector.broadcast %cst_10 : f32 to vector<8x32xf32>
    %9 = arith.mulf %3, %8 : vector<8x32xf32>
    %c0_11 = arith.constant 0 : index
    %c0_12 = arith.constant 0 : index
    %c0_13 = arith.constant 0 : index
    %10 = vector.load %arg7[%c0_11, %c0_12, %c0_13] : memref<1x8x32xf32, #tpu.memory_space<vmem>>, vector<1x8x32xf32>
    %11 = vector.shape_cast %10 : vector<1x8x32xf32> to vector<8x32xf32>
    %12 = vector.shape_cast %9 : vector<8x32xf32> to vector<1x8x32xf32>
    tpu.vector_store %arg7[%c0_11, %c0_12, %c0_13], %12 {strides = array<i32>} : memref<1x8x32xf32, #tpu.memory_space<vmem>>, vector<1x8x32xf32>,
    %c0_14 = arith.constant 0 : index
    %c0_15 = arith.constant 0 : index
    %c0_16 = arith.constant 0 : index
    %13 = vector.load %arg8[%c0_14, %c0_15, %c0_16] : memref<1x8x32xf32, #tpu.memory_space<vmem>>, vector<1x8x32xf32>
    %14 = vector.shape_cast %13 : vector<1x8x32xf32> to vector<8x32xf32>
    %15 = vector.shape_cast %5 : vector<8x32xf32> to vector<1x8x32xf32>
    tpu.vector_store %arg8[%c0_14, %c0_15, %c0_16], %15 {strides = array<i32>} : memref<1x8x32xf32, #tpu.memory_space<vmem>>, vector<1x8x32xf32>,
    %c0_17 = arith.constant 0 : index
    %c0_18 = arith.constant 0 : index
    %c0_19 = arith.constant 0 : index
    %16 = vector.load %arg9[%c0_17, %c0_18, %c0_19] : memref<1x8x32xf32, #tpu.memory_space<vmem>>, vector<1x8x32xf32>
    %17 = vector.shape_cast %16 : vector<1x8x32xf32> to vector<8x32xf32>
    %18 = vector.shape_cast %7 : vector<8x32xf32> to vector<1x8x32xf32>
    tpu.vector_store %arg9[%c0_17, %c0_18, %c0_19], %18 {strides = array<i32>} : memref<1x8x32xf32, #tpu.memory_space<vmem>>, vector<1x8x32xf32>,
    return
  }
  func.func @transform_0(%arg0: i32, %arg1: i32, %arg2: i32) -> (i32, i32, i32) {
    %c0_i32 = arith.constant 0 : i32
    %c0_i32_0 = arith.constant 0 : i32
    return %arg0, %arg1, %c0_i32 : i32, i32, i32
  }
  func.func @transform_1(%arg0: i32, %arg1: i32, %arg2: i32) -> (i32, i32) {
    %c0_i32 = arith.constant 0 : i32
    %c0_i32_0 = arith.constant 0 : i32
    return %c0_i32, %arg2 : i32, i32
  }
  func.func @transform_2(%arg0: i32, %arg1: i32, %arg2: i32) -> (i32, i32) {
    %c0_i32 = arith.constant 0 : i32
    %c0_i32_0 = arith.constant 0 : i32
    return %c0_i32, %arg2 : i32, i32
  }
  func.func @transform_3(%arg0: i32, %arg1: i32, %arg2: i32) -> (i32, i32) {
    %c0_i32 = arith.constant 0 : i32
    %c0_i32_0 = arith.constant 0 : i32
    return %c0_i32, %arg2 : i32, i32
  }
  func.func @transform_4(%arg0: i32, %arg1: i32, %arg2: i32) -> (i32, i32, i32) {
    %c0_i32 = arith.constant 0 : i32
    return %arg0, %arg1, %arg2 : i32, i32, i32
  }
  func.func @transform_5(%arg0: i32, %arg1: i32, %arg2: i32) -> (i32, i32, i32) {
    %c0_i32 = arith.constant 0 : i32
    return %arg0, %arg1, %arg2 : i32, i32, i32
  }
  func.func @transform_6(%arg0: i32, %arg1: i32, %arg2: i32) -> (i32, i32, i32) {
    %c0_i32 = arith.constant 0 : i32
    return %arg0, %arg1, %arg2 : i32, i32, i32
  }
}

</mosaic_0001>

<llo_original>
// kernel: tpu_custom_call.1
$region0: #{tpu_custom_call.1}
  #allocation0 [shape = 'u32[]', space=smem, size = 0x4, offset = 0x4, fixed_abs, tag = 'smem constant byte address 0x4 - core index']
  #allocation1 [shape = 'u32[144,128]{1,0:T(1,128)}', space=vmem, size = 0x12000, scoped, tag = 'internal scratch']
  %s0 = inlined_call_operand.hbm [shape: f32[2,8,32], index: 0, kind: input, shape index: {}]
  %s1 = inlined_call_operand.hbm [shape: f32[32,32], index: 1, kind: input, shape index: {}]
  %s2 = inlined_call_operand.hbm [shape: f32[32,32], index: 2, kind: input, shape index: {}]
  %s3 = inlined_call_operand.hbm [shape: f32[32,32], index: 3, kind: input, shape index: {}]
  %s4 = inlined_call_operand.hbm [shape: f32[2,8,32], index: 4, kind: output, shape index: {0}]
  %s5 = inlined_call_operand.hbm [shape: f32[2,8,32], index: 5, kind: output, shape index: {1}]
  %s6 = inlined_call_operand.hbm [shape: f32[2,8,32], index: 6, kind: output, shape index: {2}]
  %7 = xla_tuple %s4, %s5, %s6
  %s8 = sld [smem:[#allocation0]]
  $region81: #{tpu_custom_call.1} parent=0
    _
  %s10 = ssub.s32 1, %s8
  %s11 = scalar_select 0, %s10, %s8
  $region1: #{tpu_custom_call.1} parent=0
    #allocation2 [shape = 'u8[8192]{0}', space=vmem, size = 0x2000, scoped, tag = 'input window, operand 0']
    #allocation3 [shape = 's32[2]{0}', space=sflag, size = 0x8, scoped, tag = 'scoped memory for tpu_custom_call.1']
    #allocation4 [shape = 's32[2]{0}', space=sflag, size = 0x8, scoped, tag = 'scoped memory for tpu_custom_call.1']
    #allocation5 [shape = 'u8[16384]{0}', space=vmem, size = 0x4000, scoped, tag = 'input window, operand 1, single buffered']
    #allocation6 [shape = 's32[1]{0}', space=sflag, size = 0x4, scoped, tag = 'scoped memory for tpu_custom_call.1']
    #allocation7 [shape = 'u8[16384]{0}', space=vmem, size = 0x4000, scoped, tag = 'input window, operand 2, single buffered']
    #allocation8 [shape = 'u8[16384]{0}', space=vmem, size = 0x4000, scoped, tag = 'input window, operand 3, single buffered']
    #allocation9 [shape = 's32[1]{0}', space=sflag, size = 0x4, scoped, tag = 'scoped memory for tpu_custom_call.1']
    #allocation10 [shape = 'u8[8192]{0}', space=vmem, size = 0x2000, scoped, tag = 'output window, operand 0']
    #allocation11 [shape = 'u8[8192]{0}', space=vmem, size = 0x2000, scoped, tag = 'output window, operand 1']
    #allocation12 [shape = 's32[2]{0}', space=sflag, size = 0x8, scoped, tag = 'scoped memory for tpu_custom_call.1']
    #allocation13 [shape = 'u8[8192]{0}', space=vmem, size = 0x2000, scoped, tag = 'output window, operand 2']
    %12 = vsyncpa [#allocation3], 0
    %s13 = scalar_lea.sflag [#allocation3], 1
    %14 = vsyncpa %s13, 0
    %15 = vsyncpa [#allocation6], 0
    %16 = vsyncpa [#allocation9], 0
    %17 = vsyncpa [#allocation4], 0
    %s18 = scalar_lea.sflag [#allocation4], 1
    %19 = vsyncpa %s18, 0
    %20 = vsyncpa [#allocation12], 0
    %s21 = scalar_lea.sflag [#allocation12], 1
    %22 = vsyncpa %s21, 0
    loop: start=0, step=1, limit=4
    $region2: #{tpu_custom_call.1} parent=1 // loop_pre_header
      _
    $region3: #{tpu_custom_call.1} parent=1 // loop_header
      %s24 = sphi 0, %s28
      %p25 = scmp.ge.s32.totalorder %s24, 4
      %s31 = sphi 0, %s50
      %s32 = sphi 0, %s46
      %s33 = sphi 0, %s42
      %s34 = sphi 0, %s31
      %s35 = sphi 0, %s32
      %s36 = sphi 0, %s33
      %s37 = sphi 0, %s34
      %s38 = sphi 0, %s35
      %s39 = sphi 0, %s36
      %s55 = sphi 0, %s57
      %s58 = sphi 0, %s55
      %s59 = sphi 0, %s58
      %s75 = sphi 0, %s59
      %s81 = sphi 0, %s83
      %s84 = sphi 0, %s81
      %s85 = sphi 0, %s84
      %s101 = sphi 0, %s85
      %s107 = sphi 0, %s109
      %s110 = sphi 0, %s107
      %s111 = sphi 0, %s110
      %s127 = sphi 0, %s111
      %s133 = sphi 0, %s135
      %s136 = sphi 0, %s133
      %s137 = sphi 0, %s136
      %s153 = sphi 0, %s137
      %s163 = sphi 0, %s165
      %s166 = sphi 0, %s163
      %s167 = sphi 0, %s166
      %s183 = sphi 0, %s167
      %s193 = sphi 0, %s195
      %s196 = sphi 0, %s193
      %s197 = sphi 0, %s196
      %s213 = sphi 0, %s197
      %s223 = sphi 0, %s225
      %s226 = sphi 0, %s223
      %s227 = sphi 0, %s226
      %s243 = sphi 0, %s227
    $region4: #{tpu_custom_call.1} parent=1 // loop_header_branch
      %27 = sbr.rel (%p25) target = $region8
    $region5: #{tpu_custom_call.1} parent=1 // loop_body
      %s29 = ssub.s32 %s24, 1
      %s30 = ssub.s32 %s24, 2
      %s40 = sadd.s32 1, %s33
      %p41 = scmp.ge.s32.totalorder %s40, 1
      %s42 = scalar_select %p41, 0, %s40
      %s43 = sadd.s32 1, %s32
      %s44 = scalar_select %p41, %s43, %s32
      %p45 = scmp.ge.s32.totalorder %s44, 1
      %s46 = scalar_select %p45, 0, %s44
      %s47 = sadd.s32 1, %s31
      %s48 = scalar_select %p45, %s47, %s31
      %p49 = scmp.ge.s32.totalorder %s48, 2
      %s50 = scalar_select %p49, 0, %s48
      %s51 = ssub.s32 %s31, %s50
      %s52 = ssub.s32 %s32, %s46
      %s53 = sor.u32 %s51, %s52
      %p54 = scmp.eq.s32.totalorder %s53, 0
      %s56 = sadd.s32 %s55, 1
      %s57 = scalar_select %p54, %s55, %s56
      %p60 = pneg %p54
      %p61 = scmp.eq.s32.totalorder %s24, 1
      %p62 = por %p60, %p61
      %p63 = scmp.ne.s32.totalorder %s55, %s58
      %p64 = scmp.eq.s32.totalorder %s24, 0
      %p65 = por %p63, %p64
      %p66 = scmp.ne.s32.totalorder %s55, %s58
      %p67 = scmp.eq.s32.totalorder %s29, 1
      %p68 = por %p66, %p67
      %p69 = scmp.ne.s32.totalorder %s58, %s59
      %p70 = scmp.eq.s32.totalorder %s29, 0
      %p71 = por %p69, %p70
      %p72 = scmp.ne.s32.totalorder %s58, %s59
      %p73 = scmp.eq.s32.totalorder %s30, 1
      %p74 = por %p72, %p73
      %p76 = scmp.ne.s32.totalorder %s59, %s75
      %p77 = scmp.eq.s32.totalorder %s30, 0
      %p78 = por %p76, %p77
      %s79 = ssub.s32 %s33, %s42
      %p80 = scmp.eq.s32.totalorder %s79, 0
      %s82 = sadd.s32 %s81, 1
      %s83 = scalar_select %p80, %s81, %s82
      %p86 = pneg %p80
      %p87 = scmp.eq.s32.totalorder %s24, 1
      %p88 = por %p86, %p87
      %p89 = scmp.ne.s32.totalorder %s81, %s84
      %p90 = scmp.eq.s32.totalorder %s24, 0
      %p91 = por %p89, %p90
      %p92 = scmp.ne.s32.totalorder %s81, %s84
      %p93 = scmp.eq.s32.totalorder %s29, 1
      %p94 = por %p92, %p93
      %p95 = scmp.ne.s32.totalorder %s84, %s85
      %p96 = scmp.eq.s32.totalorder %s29, 0
      %p97 = por %p95, %p96
      %p98 = scmp.ne.s32.totalorder %s84, %s85
      %p99 = scmp.eq.s32.totalorder %s30, 1
      %p100 = por %p98, %p99
      %p102 = scmp.ne.s32.totalorder %s85, %s101
      %p103 = scmp.eq.s32.totalorder %s30, 0
      %p104 = por %p102, %p103
      %s105 = ssub.s32 %s33, %s42
      %p106 = scmp.eq.s32.totalorder %s105, 0
      %s108 = sadd.s32 %s107, 1
      %s109 = scalar_select %p106, %s107, %s108
      %p112 = pneg %p106
      %p113 = scmp.eq.s32.totalorder %s24, 1
      %p114 = por %p112, %p113
      %p115 = scmp.ne.s32.totalorder %s107, %s110
      %p116 = scmp.eq.s32.totalorder %s24, 0
      %p117 = por %p115, %p116
      %p118 = scmp.ne.s32.totalorder %s107, %s110
      %p119 = scmp.eq.s32.totalorder %s29, 1
      %p120 = por %p118, %p119
      %p121 = scmp.ne.s32.totalorder %s110, %s111
      %p122 = scmp.eq.s32.totalorder %s29, 0
      %p123 = por %p121, %p122
      %p124 = scmp.ne.s32.totalorder %s110, %s111
      %p125 = scmp.eq.s32.totalorder %s30, 1
      %p126 = por %p124, %p125
      %p128 = scmp.ne.s32.totalorder %s111, %s127
      %p129 = scmp.eq.s32.totalorder %s30, 0
      %p130 = por %p128, %p129
      %s131 = ssub.s32 %s33, %s42
      %p132 = scmp.eq.s32.totalorder %s131, 0
      %s134 = sadd.s32 %s133, 1
      %s135 = scalar_select %p132, %s133, %s134
      %p138 = pneg %p132
      %p139 = scmp.eq.s32.totalorder %s24, 1
      %p140 = por %p138, %p139
      %p141 = scmp.ne.s32.totalorder %s133, %s136
      %p142 = scmp.eq.s32.totalorder %s24, 0
      %p143 = por %p141, %p142
      %p144 = scmp.ne.s32.totalorder %s133, %s136
      %p145 = scmp.eq.s32.totalorder %s29, 1
      %p146 = por %p144, %p145
      %p147 = scmp.ne.s32.totalorder %s136, %s137
      %p148 = scmp.eq.s32.totalorder %s29, 0
      %p149 = por %p147, %p148
      %p150 = scmp.ne.s32.totalorder %s136, %s137
      %p151 = scmp.eq.s32.totalorder %s30, 1
      %p152 = por %p150, %p151
      %p154 = scmp.ne.s32.totalorder %s137, %s153
      %p155 = scmp.eq.s32.totalorder %s30, 0
      %p156 = por %p154, %p155
      %s157 = ssub.s32 %s31, %s50
      %s158 = ssub.s32 %s32, %s46
      %s159 = sor.u32 %s157, %s158
      %s160 = ssub.s32 %s33, %s42
      %s161 = sor.u32 %s159, %s160
      %p162 = scmp.eq.s32.totalorder %s161, 0
      %s164 = sadd.s32 %s163, 1
      %s165 = scalar_select %p162, %s163, %s164
      %p168 = pneg %p162
      %p169 = scmp.eq.s32.totalorder %s24, 1
      %p170 = por %p168, %p169
      %p171 = scmp.ne.s32.totalorder %s163, %s166
      %p172 = scmp.eq.s32.totalorder %s24, 0
      %p173 = por %p171, %p172
      %p174 = scmp.ne.s32.totalorder %s163, %s166
      %p175 = scmp.eq.s32.totalorder %s29, 1
      %p176 = por %p174, %p175
      %p177 = scmp.ne.s32.totalorder %s166, %s167
      %p178 = scmp.eq.s32.totalorder %s29, 0
      %p179 = por %p177, %p178
      %p180 = scmp.ne.s32.totalorder %s166, %s167
      %p181 = scmp.eq.s32.totalorder %s30, 1
      %p182 = por %p180, %p181
      %p184 = scmp.ne.s32.totalorder %s167, %s183
      %p185 = scmp.eq.s32.totalorder %s30, 0
      %p186 = por %p184, %p185
      %s187 = ssub.s32 %s31, %s50
      %s188 = ssub.s32 %s32, %s46
      %s189 = sor.u32 %s187, %s188
      %s190 = ssub.s32 %s33, %s42
      %s191 = sor.u32 %s189, %s190
      %p192 = scmp.eq.s32.totalorder %s191, 0
      %s194 = sadd.s32 %s193, 1
      %s195 = scalar_select %p192, %s193, %s194
      %p198 = pneg %p192
      %p199 = scmp.eq.s32.totalorder %s24, 1
      %p200 = por %p198, %p199
      %p201 = scmp.ne.s32.totalorder %s193, %s196
      %p202 = scmp.eq.s32.totalorder %s24, 0
      %p203 = por %p201, %p202
      %p204 = scmp.ne.s32.totalorder %s193, %s196
      %p205 = scmp.eq.s32.totalorder %s29, 1
      %p206 = por %p204, %p205
      %p207 = scmp.ne.s32.totalorder %s196, %s197
      %p208 = scmp.eq.s32.totalorder %s29, 0
      %p209 = por %p207, %p208
      %p210 = scmp.ne.s32.totalorder %s196, %s197
      %p211 = scmp.eq.s32.totalorder %s30, 1
      %p212 = por %p210, %p211
      %p214 = scmp.ne.s32.totalorder %s197, %s213
      %p215 = scmp.eq.s32.totalorder %s30, 0
      %p216 = por %p214, %p215
      %s217 = ssub.s32 %s31, %s50
      %s218 = ssub.s32 %s32, %s46
      %s219 = sor.u32 %s217, %s218
      %s220 = ssub.s32 %s33, %s42
      %s221 = sor.u32 %s219, %s220
      %p222 = scmp.eq.s32.totalorder %s221, 0
      %s224 = sadd.s32 %s223, 1
      %s225 = scalar_select %p222, %s223, %s224
      %p228 = pneg %p222
      %p229 = scmp.eq.s32.totalorder %s24, 1
      %p230 = por %p228, %p229
      %p231 = scmp.ne.s32.totalorder %s223, %s226
      %p232 = scmp.eq.s32.totalorder %s24, 0
      %p233 = por %p231, %p232
      %p234 = scmp.ne.s32.totalorder %s223, %s226
      %p235 = scmp.eq.s32.totalorder %s29, 1
      %p236 = por %p234, %p235
      %p237 = scmp.ne.s32.totalorder %s226, %s227
      %p238 = scmp.eq.s32.totalorder %s29, 0
      %p239 = por %p237, %p238
      %p240 = scmp.ne.s32.totalorder %s226, %s227
      %p241 = scmp.eq.s32.totalorder %s30, 1
      %p242 = por %p240, %p241
      %p244 = scmp.ne.s32.totalorder %s227, %s243
      %p245 = scmp.eq.s32.totalorder %s30, 0
      %p246 = por %p244, %p245
      %p247 = scmp.le.s32.totalorder 1, %s24
      %p248 = scmp.lt.s32.totalorder %s24, 3
      %p249 = pnand %p247, %p248
      %p250 = pneg %p249
      // Predicated region
      $region9: #{tpu_custom_call.1} parent=5 // pred_check
        _
      $region10: #{tpu_custom_call.1} parent=5 // pred_check_branch
        %252 = sbr.rel (%p249) target = $region12
      $region11: #{tpu_custom_call.1} parent=5 // pred_region
        %s253 = ssub.s32 %s24, 1
        // Predicated region
        $region13: #{tpu_custom_call.1} parent=11 // pred_check
          %p254 = pneg %p97
        $region14: #{tpu_custom_call.1} parent=11 // pred_check_branch
          %256 = sbr.rel (%p254) target = $region16
        $region15: #{tpu_custom_call.1} parent=11 // pred_region
          %s258 = ssub.s32 512, 512
          %259 = vsyncadd [#allocation6], %s258
          %s260 = smul.addr %s36, 128
          %s261 = scalar_lea.hbm %s1, %s260
          %s262 = sshll.u32 [#allocation5], 4
          %s263 = int_to_ptr.vmem [resolvable:$true] %s262
          %268 = dma.hbm_to_vmem [thread:$0]  %s261, 512, %s263, [#allocation6], 128, 128, 8
        $region16: #{tpu_custom_call.1} parent=11 // pred_fallthru
          _
        // Predicated region
        $region17: #{tpu_custom_call.1} parent=11 // pred_check
          %p269 = pneg %p123
        $region18: #{tpu_custom_call.1} parent=11 // pred_check_branch
          %271 = sbr.rel (%p269) target = $region20
        $region19: #{tpu_custom_call.1} parent=11 // pred_region
          %s273 = ssub.s32 512, 512
          %274 = vsyncadd [#allocation6], %s273
          %s275 = smul.addr %s36, 128
          %s276 = scalar_lea.hbm %s2, %s275
          %s277 = sshll.u32 [#allocation7], 4
          %s278 = int_to_ptr.vmem [resolvable:$true] %s277
          %283 = dma.hbm_to_vmem [thread:$0]  %s276, 512, %s278, [#allocation6], 128, 128, 8
        $region20: #{tpu_custom_call.1} parent=11 // pred_fallthru
          _
        // Predicated region
        $region21: #{tpu_custom_call.1} parent=11 // pred_check
          %p284 = pneg %p149
        $region22: #{tpu_custom_call.1} parent=11 // pred_check_branch
          %286 = sbr.rel (%p284) target = $region24
        $region23: #{tpu_custom_call.1} parent=11 // pred_region
          %s288 = ssub.s32 512, 512
          %289 = vsyncadd [#allocation9], %s288
          %s290 = smul.addr %s36, 128
          %s291 = scalar_lea.hbm %s3, %s290
          %s292 = sshll.u32 [#allocation8], 4
          %s293 = int_to_ptr.vmem [resolvable:$true] %s292
          %298 = dma.hbm_to_vmem [thread:$0]  %s291, 512, %s293, [#allocation9], 128, 128, 8
        $region24: #{tpu_custom_call.1} parent=11 // pred_fallthru
          _
      $region12: #{tpu_custom_call.1} parent=5 // pred_fallthru
        _
      %p299 = scmp.lt.s32.totalorder %s24, 2
      // Predicated region
      $region25: #{tpu_custom_call.1} parent=5 // pred_check
        %p300 = pneg %p299
      $region26: #{tpu_custom_call.1} parent=5 // pred_check_branch
        %302 = sbr.rel (%p300) target = $region28
      $region27: #{tpu_custom_call.1} parent=5 // pred_region
        // Predicated region
        $region29: #{tpu_custom_call.1} parent=27 // pred_check
          %p303 = pneg %p65
        $region30: #{tpu_custom_call.1} parent=27 // pred_check_branch
          %305 = sbr.rel (%p303) target = $region32
        $region31: #{tpu_custom_call.1} parent=27 // pred_region
          %s306 = sand.u32 %s55, 1
          %s307 = scalar_lea.sflag [#allocation3], %s306
          %s308 = sand.u32 %s55, 1
          %s309 = smul.addr %s308, 8
          %s310 = scalar_lea.vmem [#allocation2], %s309
          %s312 = ssub.s32 128, 128
          %313 = vsyncadd %s307, %s312
          %s314 = sadd.s32 %s32, %s31
          %s315 = smul.addr %s314, 128
          %s316 = scalar_lea.hbm %s0, %s315
          %s318 = sshll.u32 %s310, 4
          %s319 = int_to_ptr.vmem [resolvable:$true] %s318
          %321 = dma.hbm_to_vmem [thread:$0]  %s316, 128, %s319, %s307
        $region32: #{tpu_custom_call.1} parent=27 // pred_fallthru
          _
      $region28: #{tpu_custom_call.1} parent=5 // pred_fallthru
        _
      %p322 = scmp.le.s32.totalorder 1, %s24
      %p323 = scmp.lt.s32.totalorder %s24, 3
      %p324 = pnand %p322, %p323
      %p325 = pneg %p324
      // Predicated region
      $region33: #{tpu_custom_call.1} parent=5 // pred_check
        _
      $region34: #{tpu_custom_call.1} parent=5 // pred_check_branch
        %327 = sbr.rel (%p324) target = $region36
      $region35: #{tpu_custom_call.1} parent=5 // pred_region
        %s328 = ssub.s32 %s24, 1
        %s329 = sand.u32 %s58, 1
        %s330 = scalar_lea.sflag [#allocation3], %s329
        %s331 = sand.u32 %s58, 1
        %s332 = smul.addr %s331, 8
        %s333 = scalar_lea.vmem [#allocation2], %s332
        // Predicated region
        $region37: #{tpu_custom_call.1} parent=35 // pred_check
          %p334 = pneg %p71
        $region38: #{tpu_custom_call.1} parent=35 // pred_check_branch
          %336 = sbr.rel (%p334) target = $region40
        $region39: #{tpu_custom_call.1} parent=35 // pred_region
          %337 = dma.done %s330, 128
        $region40: #{tpu_custom_call.1} parent=35 // pred_fallthru
          _
        // Predicated region
        $region41: #{tpu_custom_call.1} parent=35 // pred_check
          %p338 = pneg %p97
        $region42: #{tpu_custom_call.1} parent=35 // pred_check_branch
          %340 = sbr.rel (%p338) target = $region44
        $region43: #{tpu_custom_call.1} parent=35 // pred_region
          %341 = dma.done [#allocation6], 512
        $region44: #{tpu_custom_call.1} parent=35 // pred_fallthru
          _
        // Predicated region
        $region45: #{tpu_custom_call.1} parent=35 // pred_check
          %p342 = pneg %p123
        $region46: #{tpu_custom_call.1} parent=35 // pred_check_branch
          %344 = sbr.rel (%p342) target = $region48
        $region47: #{tpu_custom_call.1} parent=35 // pred_region
          %345 = dma.done [#allocation6], 512
        $region48: #{tpu_custom_call.1} parent=35 // pred_fallthru
          _
        // Predicated region
        $region49: #{tpu_custom_call.1} parent=35 // pred_check
          %p346 = pneg %p149
        $region50: #{tpu_custom_call.1} parent=35 // pred_check_branch
          %348 = sbr.rel (%p346) target = $region52
        $region51: #{tpu_custom_call.1} parent=35 // pred_region
          %349 = dma.done [#allocation9], 512
        $region52: #{tpu_custom_call.1} parent=35 // pred_fallthru
          _
        %s350 = sand.u32 %s58, 1
        %s351 = scalar_lea.sflag [#allocation3], %s350
        %s352 = sand.u32 %s58, 1
        %s353 = smul.addr %s352, 8
        %s354 = scalar_lea.vmem [#allocation2], %s353
        %p355 = pneg %p71
        %p356 = pneg %p68
        %p357 = pneg %p97
        %p358 = pneg %p94
        %p359 = pneg %p123
        %p360 = pneg %p120
        %p361 = pneg %p149
        %p362 = pneg %p146
        %p363 = pneg %p179
        %p364 = pneg %p176
        %s365 = sand.u32 %s166, 1
        %s366 = scalar_lea.sflag [#allocation4], %s365
        %s367 = sand.u32 %s166, 1
        %s368 = smul.addr %s367, 8
        %s369 = scalar_lea.vmem [#allocation10], %s368
        %p370 = pneg %p209
        %p371 = pneg %p206
        %s372 = sand.u32 %s29, 1
        %s373 = scalar_lea.sflag [#allocation12], %s372
        %s374 = sand.u32 %s196, 1
        %s375 = smul.addr %s374, 8
        %s376 = scalar_lea.vmem [#allocation11], %s375
        %p377 = pneg %p239
        %p378 = pneg %p236
        %s379 = sand.u32 %s29, 1
        %s380 = scalar_lea.sflag [#allocation12], %s379
        %s381 = sand.u32 %s226, 1
        %s382 = smul.addr %s381, 8
        %s383 = scalar_lea.vmem [#allocation13], %s382
        %v384 = vld [vmem:[%s333] sm:$0xff]
        %v385 = vld [vmem:[#allocation5] sm:$0xff]
        %v386 = vld [vmem:[#allocation5 + $0x8] sm:$0xff]
        %v387 = vld [vmem:[#allocation5 + $0x10] sm:$0xff]
        %v388 = vld [vmem:[#allocation5 + $0x18] sm:$0xff]
        %vm389 = vcmask 261120
        %v391 = vsel %vm389, %v384, 0
        %393 = vmatprep.subr.mxu0 0.0
        %394 = vmatpush1.msra.mxu0 %v385
        %395 = vmatprep.subr.mxu0 0.0
        %396 = vmatpush1.msra.mxu0 %v386
        %397 = vmatprep.subr.mxu0 0.0
        %398 = vmatpush1.msra.mxu0 %v387
        %399 = vmatprep.subr.mxu0 0.0
        %400 = vmatpush1.msra.mxu0 %v388
        %401 = vmatprep.subr.mxu0 0.0
        %402 = vmatpush1.msra.mxu0 0.0
        %403 = vmatprep.subr.mxu0 0.0
        %404 = vmatpush1.msra.mxu0 0.0
        %405 = vmatprep.subr.mxu0 0.0
        %406 = vmatpush1.msra.mxu0 0.0
        %407 = vmatprep.subr.mxu0 0.0
        %408 = vmatpush1.msra.mxu0 0.0
        %409 = vmatprep.subr.mxu0 0.0
        %410 = vmatpush1.msra.mxu0 0.0
        %411 = vmatprep.subr.mxu0 0.0
        %412 = vmatpush1.msra.mxu0 0.0
        %413 = vmatprep.subr.mxu0 0.0
        %414 = vmatpush1.msra.mxu0 0.0
        %415 = vmatprep.subr.mxu0 0.0
        %416 = vmatpush1.msra.mxu0 0.0
        %417 = vmatprep.subr.mxu0 0.0
        %418 = vmatpush1.msra.mxu0 0.0
        %419 = vmatprep.subr.mxu0 0.0
        %420 = vmatpush1.msra.mxu0 0.0
        %421 = vmatprep.subr.mxu0 0.0
        %422 = vmatpush1.msra.mxu0 0.0
        %423 = vmatprep.subr.mxu0 0.0
        %424 = vmatpush1.msra.mxu0 0.0
        %425 = vmatprep.subr.mxu0 0.0
        %426 = vmatpush1.msra.mxu0 0.0
        %427 = vmatprep.subr.mxu0 0.0
        %428 = vmatpush1.msra.mxu0 0.0
        %429 = vmatprep.subr.mxu0 0.0
        %430 = vmatpush1.msra.mxu0 0.0
        %431 = vmatprep.subr.mxu0 0.0
        %432 = vmatpush1.msra.mxu0 0.0
        %433 = vmatprep.subr.mxu0 0.0
        %434 = vmatpush1.msra.mxu0 0.0
        %435 = vmatprep.subr.mxu0 0.0
        %436 = vmatpush1.msra.mxu0 0.0
        %437 = vmatprep.subr.mxu0 0.0
        %438 = vmatpush1.msra.mxu0 0.0
        %439 = vmatprep.subr.mxu0 0.0
        %440 = vmatpush1.msra.mxu0 0.0
        %441 = vmatprep.subr.mxu0 0.0
        %442 = vmatpush1.msra.mxu0 0.0
        %443 = vmatprep.subr.mxu0 0.0
        %444 = vmatpush1.msra.mxu0 0.0
        %445 = vmatprep.subr.mxu0 0.0
        %446 = vmatpush1.msra.mxu0 0.0
        %447 = vmatprep.subr.mxu0 0.0
        %448 = vmatpush1.msra.mxu0 0.0
        %449 = vmatprep.subr.mxu0 0.0
        %450 = vmatpush1.msra.mxu0 0.0
        %451 = vmatprep.subr.mxu0 0.0
        %452 = vmatpush1.msra.mxu0 0.0
        %453 = vmatprep.subr.mxu0 0.0
        %454 = vmatpush1.msra.mxu0 0.0
        %455 = vmatprep.subr.mxu0 0.0
        %456 = vmatpush1.msra.mxu0 0.0
        %457 = vmatprep.mubr.f32.mxu0 0.0
        %458 = vmatmul.mubr.f32.gmra.mrb[0].mxu0 %v391
        %v459 = vpop.f32.mrb[0].mxu0
        %v460 = vadd.f32 0.0, %v459
        %v461 = vpop.f32.mrb[0].mxu0
        %462 = vdwg.mxu0
        %v463 = vld [vmem:[#allocation7] sm:$0xff]
        %v464 = vld [vmem:[#allocation7 + $0x8] sm:$0xff]
        %v465 = vld [vmem:[#allocation7 + $0x10] sm:$0xff]
        %v466 = vld [vmem:[#allocation7 + $0x18] sm:$0xff]
        %467 = vmatprep.subr.mxu0 0.0
        %468 = vmatpush1.msra.mxu0 %v463
        %469 = vmatprep.subr.mxu0 0.0
        %470 = vmatpush1.msra.mxu0 %v464
        %471 = vmatprep.subr.mxu0 0.0
        %472 = vmatpush1.msra.mxu0 %v465
        %473 = vmatprep.subr.mxu0 0.0
        %474 = vmatpush1.msra.mxu0 %v466
        %475 = vmatprep.subr.mxu0 0.0
        %476 = vmatpush1.msra.mxu0 0.0
        %477 = vmatprep.subr.mxu0 0.0
        %478 = vmatpush1.msra.mxu0 0.0
        %479 = vmatprep.subr.mxu0 0.0
        %480 = vmatpush1.msra.mxu0 0.0
        %481 = vmatprep.subr.mxu0 0.0
        %482 = vmatpush1.msra.mxu0 0.0
        %483 = vmatprep.subr.mxu0 0.0
        %484 = vmatpush1.msra.mxu0 0.0
        %485 = vmatprep.subr.mxu0 0.0
        %486 = vmatpush1.msra.mxu0 0.0
        %487 = vmatprep.subr.mxu0 0.0
        %488 = vmatpush1.msra.mxu0 0.0
        %489 = vmatprep.subr.mxu0 0.0
        %490 = vmatpush1.msra.mxu0 0.0
        %491 = vmatprep.subr.mxu0 0.0
        %492 = vmatpush1.msra.mxu0 0.0
        %493 = vmatprep.subr.mxu0 0.0
        %494 = vmatpush1.msra.mxu0 0.0
        %495 = vmatprep.subr.mxu0 0.0
        %496 = vmatpush1.msra.mxu0 0.0
        %497 = vmatprep.subr.mxu0 0.0
        %498 = vmatpush1.msra.mxu0 0.0
        %499 = vmatprep.subr.mxu0 0.0
        %500 = vmatpush1.msra.mxu0 0.0
        %501 = vmatprep.subr.mxu0 0.0
        %502 = vmatpush1.msra.mxu0 0.0
        %503 = vmatprep.subr.mxu0 0.0
        %504 = vmatpush1.msra.mxu0 0.0
        %505 = vmatprep.subr.mxu0 0.0
        %506 = vmatpush1.msra.mxu0 0.0
        %507 = vmatprep.subr.mxu0 0.0
        %508 = vmatpush1.msra.mxu0 0.0
        %509 = vmatprep.subr.mxu0 0.0
        %510 = vmatpush1.msra.mxu0 0.0
        %511 = vmatprep.subr.mxu0 0.0
        %512 = vmatpush1.msra.mxu0 0.0
        %513 = vmatprep.subr.mxu0 0.0
        %514 = vmatpush1.msra.mxu0 0.0
        %515 = vmatprep.subr.mxu0 0.0
        %516 = vmatpush1.msra.mxu0 0.0
        %517 = vmatprep.subr.mxu0 0.0
        %518 = vmatpush1.msra.mxu0 0.0
        %519 = vmatprep.subr.mxu0 0.0
        %520 = vmatpush1.msra.mxu0 0.0
        %521 = vmatprep.subr.mxu0 0.0
        %522 = vmatpush1.msra.mxu0 0.0
        %523 = vmatprep.subr.mxu0 0.0
        %524 = vmatpush1.msra.mxu0 0.0
        %525 = vmatprep.subr.mxu0 0.0
        %526 = vmatpush1.msra.mxu0 0.0
        %527 = vmatprep.subr.mxu0 0.0
        %528 = vmatpush1.msra.mxu0 0.0
        %529 = vmatprep.subr.mxu0 0.0
        %530 = vmatpush1.msra.mxu0 0.0
        %531 = vmatprep.mubr.f32.mxu0 0.0
        %532 = vmatmul.mubr.f32.gmra.mrb[0].mxu0 %v391
        %v533 = vpop.f32.mrb[0].mxu0
        %v534 = vadd.f32 0.0, %v533
        %v535 = vpop.f32.mrb[0].mxu0
        %536 = vdwg.mxu0
        %v537 = vld [vmem:[#allocation8] sm:$0xff]
        %v538 = vld [vmem:[#allocation8 + $0x8] sm:$0xff]
        %v539 = vld [vmem:[#allocation8 + $0x10] sm:$0xff]
        %v540 = vld [vmem:[#allocation8 + $0x18] sm:$0xff]
        %541 = vmatprep.subr.mxu0 0.0
        %542 = vmatpush1.msra.mxu0 %v537
        %543 = vmatprep.subr.mxu0 0.0
        %544 = vmatpush1.msra.mxu0 %v538
        %545 = vmatprep.subr.mxu0 0.0
        %546 = vmatpush1.msra.mxu0 %v539
        %547 = vmatprep.subr.mxu0 0.0
        %548 = vmatpush1.msra.mxu0 %v540
        %549 = vmatprep.subr.mxu0 0.0
        %550 = vmatpush1.msra.mxu0 0.0
        %551 = vmatprep.subr.mxu0 0.0
        %552 = vmatpush1.msra.mxu0 0.0
        %553 = vmatprep.subr.mxu0 0.0
        %554 = vmatpush1.msra.mxu0 0.0
        %555 = vmatprep.subr.mxu0 0.0
        %556 = vmatpush1.msra.mxu0 0.0
        %557 = vmatprep.subr.mxu0 0.0
        %558 = vmatpush1.msra.mxu0 0.0
        %559 = vmatprep.subr.mxu0 0.0
        %560 = vmatpush1.msra.mxu0 0.0
        %561 = vmatprep.subr.mxu0 0.0
        %562 = vmatpush1.msra.mxu0 0.0
        %563 = vmatprep.subr.mxu0 0.0
        %564 = vmatpush1.msra.mxu0 0.0
        %565 = vmatprep.subr.mxu0 0.0
        %566 = vmatpush1.msra.mxu0 0.0
        %567 = vmatprep.subr.mxu0 0.0
        %568 = vmatpush1.msra.mxu0 0.0
        %569 = vmatprep.subr.mxu0 0.0
        %570 = vmatpush1.msra.mxu0 0.0
        %571 = vmatprep.subr.mxu0 0.0
        %572 = vmatpush1.msra.mxu0 0.0
        %573 = vmatprep.subr.mxu0 0.0
        %574 = vmatpush1.msra.mxu0 0.0
        %575 = vmatprep.subr.mxu0 0.0
        %576 = vmatpush1.msra.mxu0 0.0
        %577 = vmatprep.subr.mxu0 0.0
        %578 = vmatpush1.msra.mxu0 0.0
        %579 = vmatprep.subr.mxu0 0.0
        %580 = vmatpush1.msra.mxu0 0.0
        %581 = vmatprep.subr.mxu0 0.0
        %582 = vmatpush1.msra.mxu0 0.0
        %583 = vmatprep.subr.mxu0 0.0
        %584 = vmatpush1.msra.mxu0 0.0
        %585 = vmatprep.subr.mxu0 0.0
        %586 = vmatpush1.msra.mxu0 0.0
        %587 = vmatprep.subr.mxu0 0.0
        %588 = vmatpush1.msra.mxu0 0.0
        %589 = vmatprep.subr.mxu0 0.0
        %590 = vmatpush1.msra.mxu0 0.0
        %591 = vmatprep.subr.mxu0 0.0
        %592 = vmatpush1.msra.mxu0 0.0
        %593 = vmatprep.subr.mxu0 0.0
        %594 = vmatpush1.msra.mxu0 0.0
        %595 = vmatprep.subr.mxu0 0.0
        %596 = vmatpush1.msra.mxu0 0.0
        %597 = vmatprep.subr.mxu0 0.0
        %598 = vmatpush1.msra.mxu0 0.0
        %599 = vmatprep.subr.mxu0 0.0
        %600 = vmatpush1.msra.mxu0 0.0
        %601 = vmatprep.subr.mxu0 0.0
        %602 = vmatpush1.msra.mxu0 0.0
        %603 = vmatprep.subr.mxu0 0.0
        %604 = vmatpush1.msra.mxu0 0.0
        %605 = vmatprep.mubr.f32.mxu0 0.0
        %606 = vmatmul.mubr.f32.gmra.mrb[0].mxu0 %v391
        %v607 = vpop.f32.mrb[0].mxu0
        %v608 = vadd.f32 0.0, %v607
        %v609 = vpop.f32.mrb[0].mxu0
        %610 = vdwg.mxu0
        %v611 = vmul.f32 %v460, 0.35355338
        %612 = vst.msk [vmem:[%s369] sm:$0xff] %vm389, %v611
        %613 = vst.msk [vmem:[%s376] sm:$0xff] %vm389, %v534
        %614 = vst.msk [vmem:[%s383] sm:$0xff] %vm389, %v608
        %s615 = sand.u32 %s166, 1
        %s616 = scalar_lea.sflag [#allocation4], %s615
        %s617 = sand.u32 %s166, 1
        %s618 = smul.addr %s617, 8
        %s619 = scalar_lea.vmem [#allocation10], %s618
        %s620 = sand.u32 %s29, 1
        %s621 = scalar_lea.sflag [#allocation12], %s620
        %s622 = sand.u32 %s196, 1
        %s623 = smul.addr %s622, 8
        %s624 = scalar_lea.vmem [#allocation11], %s623
        %s625 = sand.u32 %s29, 1
        %s626 = scalar_lea.sflag [#allocation12], %s625
        %s627 = sand.u32 %s226, 1
        %s628 = smul.addr %s627, 8
        %s629 = scalar_lea.vmem [#allocation13], %s628
        // Predicated region
        $region53: #{tpu_custom_call.1} parent=35 // pred_check
          %p630 = pneg %p176
        $region54: #{tpu_custom_call.1} parent=35 // pred_check_branch
          %632 = sbr.rel (%p630) target = $region56
        $region55: #{tpu_custom_call.1} parent=35 // pred_region
          %s634 = ssub.s32 128, 128
          %635 = vsyncadd %s616, %s634
          %s636 = sadd.s32 %s36, %s35
          %s637 = sadd.s32 %s636, %s34
          %s638 = smul.addr %s637, 128
          %s639 = scalar_lea.hbm %s4, %s638
          %s641 = sshll.u32 %s619, 4
          %s642 = int_to_ptr.vmem [resolvable:$true] %s641
          %644 = dma.vmem_to_hbm [thread:$0]  %s642, 128, %s639, %s616
        $region56: #{tpu_custom_call.1} parent=35 // pred_fallthru
          _
        // Predicated region
        $region57: #{tpu_custom_call.1} parent=35 // pred_check
          %p645 = pneg %p206
        $region58: #{tpu_custom_call.1} parent=35 // pred_check_branch
          %647 = sbr.rel (%p645) target = $region60
        $region59: #{tpu_custom_call.1} parent=35 // pred_region
          %s649 = ssub.s32 128, 128
          %650 = vsyncadd %s621, %s649
          %s651 = sadd.s32 %s36, %s35
          %s652 = sadd.s32 %s651, %s34
          %s653 = smul.addr %s652, 128
          %s654 = scalar_lea.hbm %s5, %s653
          %s656 = sshll.u32 %s624, 4
          %s657 = int_to_ptr.vmem [resolvable:$true] %s656
          %659 = dma.vmem_to_hbm [thread:$0]  %s657, 128, %s654, %s621
        $region60: #{tpu_custom_call.1} parent=35 // pred_fallthru
          _
        // Predicated region
        $region61: #{tpu_custom_call.1} parent=35 // pred_check
          %p660 = pneg %p236
        $region62: #{tpu_custom_call.1} parent=35 // pred_check_branch
          %662 = sbr.rel (%p660) target = $region64
        $region63: #{tpu_custom_call.1} parent=35 // pred_region
          %s664 = ssub.s32 128, 128
          %665 = vsyncadd %s626, %s664
          %s666 = sadd.s32 %s36, %s35
          %s667 = sadd.s32 %s666, %s34
          %s668 = smul.addr %s667, 128
          %s669 = scalar_lea.hbm %s6, %s668
          %s671 = sshll.u32 %s629, 4
          %s672 = int_to_ptr.vmem [resolvable:$true] %s671
          %674 = dma.vmem_to_hbm [thread:$0]  %s672, 128, %s669, %s626
        $region64: #{tpu_custom_call.1} parent=35 // pred_fallthru
          _
      $region36: #{tpu_custom_call.1} parent=5 // pred_fallthru
        _
      %p675 = scmp.le.s32.totalorder 2, %s24
      // Predicated region
      $region65: #{tpu_custom_call.1} parent=5 // pred_check
        %p676 = pneg %p675
      $region66: #{tpu_custom_call.1} parent=5 // pred_check_branch
        %678 = sbr.rel (%p676) target = $region68
      $region67: #{tpu_custom_call.1} parent=5 // pred_region
        %s679 = ssub.s32 %s24, 2
        // Predicated region
        $region69: #{tpu_custom_call.1} parent=67 // pred_check
          %p680 = pneg %p182
        $region70: #{tpu_custom_call.1} parent=67 // pred_check_branch
          %682 = sbr.rel (%p680) target = $region72
        $region71: #{tpu_custom_call.1} parent=67 // pred_region
          %s683 = sand.u32 %s167, 1
          %s684 = scalar_lea.sflag [#allocation4], %s683
          %s685 = sand.u32 %s167, 1
          %s686 = smul.addr %s685, 8
          %s687 = scalar_lea.vmem [#allocation10], %s686
          %688 = dma.done %s684, 128
        $region72: #{tpu_custom_call.1} parent=67 // pred_fallthru
          _
        // Predicated region
        $region73: #{tpu_custom_call.1} parent=67 // pred_check
          %p689 = pneg %p212
        $region74: #{tpu_custom_call.1} parent=67 // pred_check_branch
          %691 = sbr.rel (%p689) target = $region76
        $region75: #{tpu_custom_call.1} parent=67 // pred_region
          %s692 = sand.u32 %s30, 1
          %s693 = scalar_lea.sflag [#allocation12], %s692
          %s694 = sand.u32 %s197, 1
          %s695 = smul.addr %s694, 8
          %s696 = scalar_lea.vmem [#allocation11], %s695
          %697 = dma.done %s693, 128
        $region76: #{tpu_custom_call.1} parent=67 // pred_fallthru
          _
        // Predicated region
        $region77: #{tpu_custom_call.1} parent=67 // pred_check
          %p698 = pneg %p242
        $region78: #{tpu_custom_call.1} parent=67 // pred_check_branch
          %700 = sbr.rel (%p698) target = $region80
        $region79: #{tpu_custom_call.1} parent=67 // pred_region
          %s701 = sand.u32 %s30, 1
          %s702 = scalar_lea.sflag [#allocation12], %s701
          %s703 = sand.u32 %s227, 1
          %s704 = smul.addr %s703, 8
          %s705 = scalar_lea.vmem [#allocation13], %s704
          %706 = dma.done %s702, 128
        $region80: #{tpu_custom_call.1} parent=67 // pred_fallthru
          _
      $region68: #{tpu_custom_call.1} parent=5 // pred_fallthru
        _
    $region6: #{tpu_custom_call.1} parent=1 // loop_footer
      %s28 = sadd.s32 1, %s24
    $region7: #{tpu_custom_call.1} parent=1 // loop_footer_branch
      %23 = sbr.rel target = $region3
    $region8: #{tpu_custom_call.1} parent=1 // loop_exit
      _
    %707 = vsyncpa [#allocation3], 1
    %s708 = scalar_lea.sflag [#allocation3], 1
    %709 = vsyncpa %s708, 1
    %710 = vsyncpa [#allocation6], 1
    %711 = vsyncpa [#allocation9], 1
    %712 = vsyncpa [#allocation4], 1
    %s713 = scalar_lea.sflag [#allocation4], 1
    %714 = vsyncpa %s713, 1
    %715 = vsyncpa [#allocation12], 1
    %s716 = scalar_lea.sflag [#allocation12], 1
    %717 = vsyncpa %s716, 1

</llo_original>
